<compile_context>
chip_gen: v5e
topology: v5e:2x2
jax: 0.10.0
libtpu: 0.0.40
codegen_flags: <defaults>
</compile_context>

<pallas_src>
import jax
import jax.numpy as jnp
from jax.experimental import pallas as pl
from jax.experimental.pallas import tpu as pltpu


def _round_up(x, m):
    return (x + m - 1) // m * m


def _head_kernel(x_ref, w_neck_ref, shift_ref, w_cls_ref, out_ref, feat_ref):
    # x_ref: (TB, S, C) channels-last backbone features (bf16 in, f32 accum)
    x = x_ref[...]
    s = x.shape[1]
    xf = x.astype(jnp.float32)

    # Global average pool + global max pool over the spatial axis (f32 accum).
    pooled = jnp.sum(xf, axis=1) * (1.0 / float(s)) + jnp.max(xf, axis=1)  # (TB, C)

    # fcneck (BN scale already folded into the weight columns) -> MXU, f32 acc.
    neck = jnp.dot(pooled.astype(w_neck_ref.dtype), w_neck_ref[...],
                   preferred_element_type=jnp.float32)          # (TB, Np)

    # fcneck_bn residual shift (beta - mean*scale), broadcast over the tile.
    feat = neck + shift_ref[...]                                # (TB, Np)
    feat_ref[...] = feat.astype(feat_ref.dtype)

    # classifier: Linear(neck -> num_classes, bias=False), f32 accumulation.
    out_ref[...] = jnp.dot(feat.astype(w_cls_ref.dtype), w_cls_ref[...],
                           preferred_element_type=jnp.float32
                           ).astype(out_ref.dtype)


def camera_baseline_head(x_bsc, w_neck, bn_gamma, bn_beta, bn_mean, bn_var,
                         w_cls, *, eps=1e-5, block_b=128,
                         compute_dtype=jnp.bfloat16):
    """CameraBaseline head.

    x_bsc:  (B, S, C) backbone feature map, channels-last.
    w_neck: (C, N)    fcneck weight, already transposed (in, out).
    bn_*:   (N,)      BatchNorm1d affine params + running stats.
    w_cls:  (N, K)    classifier weight, transposed (in, out).
    Returns (out (B, K) f32, global_feat (B, N) f32).
    """
    B, S, C = x_bsc.shape
    N = w_neck.shape[1]
    K = w_cls.shape[1]

    # ---- fold BatchNorm1d (inference) into fcneck weight + additive shift ----
    scale = (bn_gamma / jnp.sqrt(bn_var + eps)).astype(jnp.float32)   # (N,)
    shift = (bn_beta - bn_mean * scale).astype(jnp.float32)           # (N,)
    w_neck_f = w_neck.astype(jnp.float32) * scale[None, :]            # (C, N)

    # ---- pad neck / class dims to lane-dense multiples of 128 ----
    n_pad = _round_up(N, 128)
    k_pad = _round_up(K, 128)
    w_neck_p = jnp.zeros((C, n_pad), compute_dtype
                         ).at[:, :N].set(w_neck_f.astype(compute_dtype))
    shift_p = jnp.zeros((1, n_pad), jnp.float32).at[:, :N].set(shift)
    w_cls_p = jnp.zeros((n_pad, k_pad), compute_dtype
                        ).at[:N, :K].set(w_cls.astype(compute_dtype))

    # ---- batch tiling: pipeline x through VMEM, weights stay resident ----
    tb = min(_round_up(block_b, 8), _round_up(B, 8))
    b_pad = _round_up(B, tb)
    x_p = x_bsc.astype(compute_dtype)
    if b_pad != B:
        # zero rows only feed padded output rows, which are sliced off below.
        x_p = jnp.pad(x_p, ((0, b_pad - B), (0, 0), (0, 0)))
    grid = (b_pad // tb,)

    itemsize = jnp.dtype(compute_dtype).itemsize
    cost = pl.CostEstimate(
        flops=2 * b_pad * S * C + 2 * b_pad * C * n_pad + 2 * b_pad * n_pad * k_pad,
        transcendentals=0,
        bytes_accessed=(x_p.size + w_neck_p.size + w_cls_p.size) * itemsize
        + shift_p.size * 4 + b_pad * (n_pad + k_pad) * 4,
    )

    out_p, feat_p = pl.pallas_call(
        _head_kernel,
        out_shape=(jax.ShapeDtypeStruct((b_pad, k_pad), jnp.float32),
                   jax.ShapeDtypeStruct((b_pad, n_pad), jnp.float32)),
        grid=grid,
        in_specs=[
            pl.BlockSpec((tb, S, C), lambda i: (i, 0, 0)),   # x: tiled over batch
            pl.BlockSpec((C, n_pad), lambda i: (0, 0)),      # w_neck: resident
            pl.BlockSpec((1, n_pad), lambda i: (0, 0)),      # bn shift: resident
            pl.BlockSpec((n_pad, k_pad), lambda i: (0, 0)),  # w_cls: resident
        ],
        out_specs=(pl.BlockSpec((tb, k_pad), lambda i: (i, 0)),
                   pl.BlockSpec((tb, n_pad), lambda i: (i, 0))),
        compiler_params=pltpu.CompilerParams(
            dimension_semantics=("parallel",)),
        cost_estimate=cost,
    )(x_p, w_neck_p, shift_p, w_cls_p)

    return out_p[:B, :K], feat_p[:B, :N]


def _reference_head(x_bsc, w_neck, gamma, beta, mean, var, w_cls, eps=1e-5):
    x = x_bsc.astype(jnp.float32)
    pooled = jnp.mean(x, axis=1) + jnp.max(x, axis=1)
    neck = pooled @ w_neck.astype(jnp.float32)
    scale = gamma / jnp.sqrt(var + eps)
    feat = neck * scale + (beta - mean * scale)
    out = feat @ w_cls.astype(jnp.float32)
    return out, feat


def _xavier_uniform(key, shape):
    # nn.init.xavier_uniform_ for a Linear weight of shape (out, in):
    fan_out, fan_in = shape
    bound = (6.0 / (fan_in + fan_out)) ** 0.5
    return jax.random.uniform(key, shape, jnp.float32, -bound, bound)


if __name__ == "__main__":
    # Small shapes consistent with the forward pass (real model: C=2048).
    B = 2             # batch
    C = 128           # in_planes (backbone channels)
    H = W = 4         # spatial extent of backbone feature map
    S = H * W
    NECK = 64         # neck_planes
    NUM_CLASSES = 32  # num_classes

    key = jax.random.PRNGKey(0)
    kx, kneck, kcls = jax.random.split(key, 3)

    # Backbone output feature map, NCHW in PyTorch -> our [B, S, C] layout.
    x_nchw = jax.random.normal(kx, (B, C, H, W), jnp.float32)
    x_bsc = jnp.transpose(x_nchw.reshape(B, C, S), (0, 2, 1))      # (B, S, C)

    # fcneck.weight: (neck, in_planes), xavier_uniform; used transposed (C, N).
    w_neck_t = _xavier_uniform(kneck, (NECK, C)).T                 # (C, NECK)

    # fcneck_bn: weight=1, bias=0 (weights_init_kaiming); fresh running stats.
    gamma = jnp.ones((NECK,), jnp.float32)
    beta = jnp.zeros((NECK,), jnp.float32)
    running_mean = jnp.zeros((NECK,), jnp.float32)
    running_var = jnp.ones((NECK,), jnp.float32)

    # classifier.weight: (num_classes, neck), normal(std=0.001); transposed.
    w_cls_t = (0.001 * jax.random.normal(kcls, (NUM_CLASSES, NECK),
                                         jnp.float32)).T           # (NECK, K)

    out, global_feat = camera_baseline_head(
        x_bsc, w_neck_t, gamma, beta, running_mean, running_var, w_cls_t)
    jax.block_until_ready((out, global_feat))

    assert out.shape == (B, NUM_CLASSES)
    assert global_feat.shape == (B, NECK)

    out_ref, feat_ref = _reference_head(
        x_bsc, w_neck_t, gamma, beta, running_mean, running_var, w_cls_t)
    assert jnp.all(jnp.isfinite(out)) and jnp.all(jnp.isfinite(global_feat))
    assert jnp.allclose(global_feat, feat_ref, rtol=5e-2, atol=5e-2), (
        "global_feat mismatch")
    assert jnp.allclose(out, out_ref, rtol=5e-2, atol=5e-2), "out mismatch"

    print("KERNEL_OK")
</pallas_src>

<mosaic_0001>
module attributes {stable_mosaic.version = 11 : i64} {
  func.func @_head_kernel(%arg0: i32, %arg1: memref<8x16x128xbf16, #tpu.memory_space<vmem>>, %arg2: memref<128x128xbf16, #tpu.memory_space<vmem>>, %arg3: memref<1x128xf32, #tpu.memory_space<vmem>>, %arg4: memref<128x128xbf16, #tpu.memory_space<vmem>>, %arg5: memref<8x128xf32, #tpu.memory_space<vmem>>, %arg6: memref<8x128xf32, #tpu.memory_space<vmem>>) attributes {dimension_semantics = [#tpu.dimension_semantics<parallel>], iteration_bounds = array<i64: 1>, scalar_prefetch = 0 : i64, scratch_operands = 0 : i64, tpu.core_type = #tpu.core_type<tc>, window_params = [{transform_indices = @transform_0, window_bounds = array<i64: 8, 16, 128>}, {pipeline_mode = #tpu.pipeline_mode<synchronous>, transform_indices = @transform_1, window_bounds = array<i64: 128, 128>}, {pipeline_mode = #tpu.pipeline_mode<synchronous>, transform_indices = @transform_2, window_bounds = array<i64: 1, 128>}, {pipeline_mode = #tpu.pipeline_mode<synchronous>, transform_indices = @transform_3, window_bounds = array<i64: 128, 128>}, {transform_indices = @transform_4, window_bounds = array<i64: 8, 128>}, {transform_indices = @transform_5, window_bounds = array<i64: 8, 128>}]} {
    %c0 = arith.constant 0 : index
    %c0_0 = arith.constant 0 : index
    %c0_1 = arith.constant 0 : index
    %0 = vector.load %arg1[%c0, %c0_0, %c0_1] : memref<8x16x128xbf16, #tpu.memory_space<vmem>>, vector<8x16x128xbf16>
    %1 = arith.extf %0 : vector<8x16x128xbf16> to vector<8x16x128xf32>
    %cst = arith.constant dense<0.000000e+00> : vector<8x128xf32>
    %2 = vector.multi_reduction <add>, %1, %cst [1] : vector<8x16x128xf32> to vector<8x128xf32>
    %cst_2 = arith.constant 6.250000e-02 : f32
    %3 = vector.broadcast %cst_2 : f32 to vector<8x128xf32>
    %4 = arith.mulf %2, %3 : vector<8x128xf32>
    %cst_3 = arith.constant dense<0xFF800000> : vector<8x128xf32>
    %5 = vector.multi_reduction <maximumf>, %1, %cst_3 [1] : vector<8x16x128xf32> to vector<8x128xf32>
    %6 = arith.addf %4, %5 : vector<8x128xf32>
    %7 = arith.truncf %6 : vector<8x128xf32> to vector<8x128xbf16>
    %c0_4 = arith.constant 0 : index
    %c0_5 = arith.constant 0 : index
    %8 = vector.load %arg2[%c0_4, %c0_5] : memref<128x128xbf16, #tpu.memory_space<vmem>>, vector<128x128xbf16>
    %cst_6 = arith.constant dense<0.000000e+00> : vector<8x128xf32>
    %9 = tpu.matmul %7, %8, %cst_6 {dimension_numbers = #tpu.dot_dimension_numbers<[1], [0], [0], [1], [0, 0, 1, 1], [], []>} : vector<8x128xbf16>, vector<128x128xbf16>, vector<8x128xf32> -> vector<8x128xf32>
    %c0_7 = arith.constant 0 : index
    %c0_8 = arith.constant 0 : index
    %10 = vector.load %arg3[%c0_7, %c0_8] : memref<1x128xf32, #tpu.memory_space<vmem>>, vector<1x128xf32>
    %11 = vector.broadcast %10 : vector<1x128xf32> to vector<8x128xf32>
    %12 = arith.addf %9, %11 : vector<8x128xf32>
    %c0_9 = arith.constant 0 : index
    %c0_10 = arith.constant 0 : index
    %13 = vector.load %arg6[%c0_9, %c0_10] : memref<8x128xf32, #tpu.memory_space<vmem>>, vector<8x128xf32>
    tpu.vector_store %arg6[%c0_9, %c0_10], %12 {strides = array<i32>} : memref<8x128xf32, #tpu.memory_space<vmem>>, vector<8x128xf32>,
    %14 = arith.truncf %12 : vector<8x128xf32> to vector<8x128xbf16>
    %c0_11 = arith.constant 0 : index
    %c0_12 = arith.constant 0 : index
    %15 = vector.load %arg4[%c0_11, %c0_12] : memref<128x128xbf16, #tpu.memory_space<vmem>>, vector<128x128xbf16>
    %cst_13 = arith.constant dense<0.000000e+00> : vector<8x128xf32>
    %16 = tpu.matmul %14, %15, %cst_13 {dimension_numbers = #tpu.dot_dimension_numbers<[1], [0], [0], [1], [0, 0, 1, 1], [], []>} : vector<8x128xbf16>, vector<128x128xbf16>, vector<8x128xf32> -> vector<8x128xf32>
    %c0_14 = arith.constant 0 : index
    %c0_15 = arith.constant 0 : index
    %17 = vector.load %arg5[%c0_14, %c0_15] : memref<8x128xf32, #tpu.memory_space<vmem>>, vector<8x128xf32>
    tpu.vector_store %arg5[%c0_14, %c0_15], %16 {strides = array<i32>} : memref<8x128xf32, #tpu.memory_space<vmem>>, vector<8x128xf32>,
    return
  }
  func.func @transform_0(%arg0: i32) -> (i32, i32, i32) {
    %c0_i32 = arith.constant 0 : i32
    %c0_i32_0 = arith.constant 0 : i32
    %c0_i32_1 = arith.constant 0 : i32
    return %arg0, %c0_i32, %c0_i32_0 : i32, i32, i32
  }
  func.func @transform_1(%arg0: i32) -> (i32, i32) {
    %c0_i32 = arith.constant 0 : i32
    %c0_i32_0 = arith.constant 0 : i32
    %c0_i32_1 = arith.constant 0 : i32
    return %c0_i32, %c0_i32_0 : i32, i32
  }
  func.func @transform_2(%arg0: i32) -> (i32, i32) {
    %c0_i32 = arith.constant 0 : i32
    %c0_i32_0 = arith.constant 0 : i32
    %c0_i32_1 = arith.constant 0 : i32
    return %c0_i32, %c0_i32_0 : i32, i32
  }
  func.func @transform_3(%arg0: i32) -> (i32, i32) {
    %c0_i32 = arith.constant 0 : i32
    %c0_i32_0 = arith.constant 0 : i32
    %c0_i32_1 = arith.constant 0 : i32
    return %c0_i32, %c0_i32_0 : i32, i32
  }
  func.func @transform_4(%arg0: i32) -> (i32, i32) {
    %c0_i32 = arith.constant 0 : i32
    %c0_i32_0 = arith.constant 0 : i32
    return %arg0, %c0_i32 : i32, i32
  }
  func.func @transform_5(%arg0: i32) -> (i32, i32) {
    %c0_i32 = arith.constant 0 : i32
    %c0_i32_0 = arith.constant 0 : i32
    return %arg0, %c0_i32 : i32, i32
  }
}

</mosaic_0001>

<llo_original>
// kernel: tpu_custom_call.1
$region0: #{tpu_custom_call.1}
  #allocation0 [shape = 'u32[]', space=smem, size = 0x4, offset = 0x4, fixed_abs, tag = 'smem constant byte address 0x4 - core index']
  #allocation1 [shape = 'u32[72,128]{1,0:T(1,128)}', space=vmem, size = 0x9000, scoped, tag = 'internal scratch']
  %s0 = inlined_call_operand.hbm [shape: bf16[8,16,128], index: 0, kind: input, shape index: {}]
  %s1 = inlined_call_operand.hbm [shape: bf16[128,128], index: 1, kind: input, shape index: {}]
  %s2 = inlined_call_operand.vmem [shape: f32[1,128], index: 2, kind: input, shape index: {}]
  %s3 = inlined_call_operand.hbm [shape: bf16[128,128], index: 3, kind: input, shape index: {}]
  %s4 = inlined_call_operand.hbm [shape: f32[8,128], index: 4, kind: output, shape index: {0}]
  %s5 = inlined_call_operand.hbm [shape: f32[8,128], index: 5, kind: output, shape index: {1}]
  %6 = xla_tuple %s4, %s5
  %s7 = sld [smem:[#allocation0]]
  $region46: #{tpu_custom_call.1} parent=0
    _
  %s9 = ssub.s32 1, %s7
  %s10 = scalar_select 0, %s9, %s7
  $region1: #{tpu_custom_call.1} parent=0
    #allocation2 [shape = 'u8[32768]{0}', space=vmem, size = 0x8000, scoped, tag = 'input window, operand 0, single buffered']
    #allocation3 [shape = 's32[1]{0}', space=sflag, size = 0x4, scoped, tag = 'scoped memory for tpu_custom_call.1']
    #allocation4 [shape = 's32[1]{0}', space=sflag, size = 0x4, scoped, tag = 'scoped memory for tpu_custom_call.1']
    #allocation5 [shape = 'u8[32768]{0}', space=vmem, size = 0x8000, scoped, tag = 'input window, operand 1, single buffered']
    #allocation6 [shape = 's32[1]{0}', space=sflag, size = 0x4, scoped, tag = 'scoped memory for tpu_custom_call.1']
    #allocation7 [shape = 'u8[32768]{0}', space=vmem, size = 0x8000, scoped, tag = 'input window, operand 3, single buffered']
    #allocation8 [shape = 'u8[4096]{0}', space=vmem, size = 0x1000, scoped, tag = 'output window, operand 0, single buffered']
    #allocation9 [shape = 'u8[4096]{0}', space=vmem, size = 0x1000, scoped, tag = 'output window, operand 1, single buffered']
    #allocation10 [shape = 's32[1]{0}', space=sflag, size = 0x4, scoped, tag = 'scoped memory for tpu_custom_call.1']
    %11 = vsyncpa [#allocation3], 0
    %12 = vsyncpa [#allocation6], 0
    %13 = vsyncpa [#allocation4], 0
    %14 = vsyncpa [#allocation10], 0
    // Predicated region
    $region2: #{tpu_custom_call.1} parent=1 // pred_check
      _
    $region3: #{tpu_custom_call.1} parent=1 // pred_check_branch
      %16 = sbr.rel (0) target = $region5
    $region4: #{tpu_custom_call.1} parent=1 // pred_region
      %18 = vsyncadd [#allocation3], 0
      %s19 = sshll.u32 %s0, 4
      %s20 = int_to_ptr.hbm [resolvable:$true] %s19
      %s21 = sshll.u32 [#allocation2], 4
      %s22 = int_to_ptr.vmem [resolvable:$true] %s21
      %27 = dma.hbm_to_vmem [thread:$0]  %s20, 1024, %s22, [#allocation3], 64, 64, 4
    $region5: #{tpu_custom_call.1} parent=1 // pred_fallthru
      _
    // Predicated region
    $region6: #{tpu_custom_call.1} parent=1 // pred_check
      _
    $region7: #{tpu_custom_call.1} parent=1 // pred_check_branch
      %29 = sbr.rel (0) target = $region9
    $region8: #{tpu_custom_call.1} parent=1 // pred_region
      %31 = vsyncadd [#allocation6], 0
      %s32 = sshll.u32 %s1, 4
      %s33 = int_to_ptr.hbm [resolvable:$true] %s32
      %s34 = sshll.u32 [#allocation5], 4
      %s35 = int_to_ptr.vmem [resolvable:$true] %s34
      %40 = dma.hbm_to_vmem [thread:$0]  %s33, 1024, %s35, [#allocation6], 64, 64, 4
    $region9: #{tpu_custom_call.1} parent=1 // pred_fallthru
      _
    // Predicated region
    $region10: #{tpu_custom_call.1} parent=1 // pred_check
      _
    $region11: #{tpu_custom_call.1} parent=1 // pred_check_branch
      %42 = sbr.rel (0) target = $region13
    $region12: #{tpu_custom_call.1} parent=1 // pred_region
      _
    $region13: #{tpu_custom_call.1} parent=1 // pred_fallthru
      _
    // Predicated region
    $region14: #{tpu_custom_call.1} parent=1 // pred_check
      _
    $region15: #{tpu_custom_call.1} parent=1 // pred_check_branch
      %44 = sbr.rel (0) target = $region17
    $region16: #{tpu_custom_call.1} parent=1 // pred_region
      %46 = vsyncadd [#allocation6], 0
      %s47 = sshll.u32 %s3, 4
      %s48 = int_to_ptr.hbm [resolvable:$true] %s47
      %s49 = sshll.u32 [#allocation7], 4
      %s50 = int_to_ptr.vmem [resolvable:$true] %s49
      %55 = dma.hbm_to_vmem [thread:$0]  %s48, 1024, %s50, [#allocation6], 64, 64, 4
    $region17: #{tpu_custom_call.1} parent=1 // pred_fallthru
      _
    // Predicated region
    $region18: #{tpu_custom_call.1} parent=1 // pred_check
      _
    $region19: #{tpu_custom_call.1} parent=1 // pred_check_branch
      %57 = sbr.rel (0) target = $region21
    $region20: #{tpu_custom_call.1} parent=1 // pred_region
      %59 = dma.done [#allocation3], 1024
    $region21: #{tpu_custom_call.1} parent=1 // pred_fallthru
      _
    // Predicated region
    $region22: #{tpu_custom_call.1} parent=1 // pred_check
      _
    $region23: #{tpu_custom_call.1} parent=1 // pred_check_branch
      %61 = sbr.rel (0) target = $region25
    $region24: #{tpu_custom_call.1} parent=1 // pred_region
      %63 = dma.done [#allocation6], 1024
    $region25: #{tpu_custom_call.1} parent=1 // pred_fallthru
      _
    // Predicated region
    $region26: #{tpu_custom_call.1} parent=1 // pred_check
      _
    $region27: #{tpu_custom_call.1} parent=1 // pred_check_branch
      %65 = sbr.rel (0) target = $region29
    $region28: #{tpu_custom_call.1} parent=1 // pred_region
      %67 = dma.done [#allocation6], 1024
    $region29: #{tpu_custom_call.1} parent=1 // pred_fallthru
      _
    %v68 = vld [vmem:[#allocation2] sm:$0xf]
    %v69 = vld [vmem:[#allocation2 + $0x4] sm:$0xf]
    %v70 = vld [vmem:[#allocation2 + $0x8] sm:$0xf]
    %v71 = vld [vmem:[#allocation2 + $0xc] sm:$0xf]
    %v72 = vld [vmem:[#allocation2 + $0x10] sm:$0xf]
    %v73 = vld [vmem:[#allocation2 + $0x14] sm:$0xf]
    %v74 = vld [vmem:[#allocation2 + $0x18] sm:$0xf]
    %v75 = vld [vmem:[#allocation2 + $0x1c] sm:$0xf]
    %v76 = vld [vmem:[#allocation2 + $0x20] sm:$0xf]
    %v77 = vld [vmem:[#allocation2 + $0x24] sm:$0xf]
    %v78 = vld [vmem:[#allocation2 + $0x28] sm:$0xf]
    %v79 = vld [vmem:[#allocation2 + $0x2c] sm:$0xf]
    %v80 = vld [vmem:[#allocation2 + $0x30] sm:$0xf]
    %v81 = vld [vmem:[#allocation2 + $0x34] sm:$0xf]
    %v82 = vld [vmem:[#allocation2 + $0x38] sm:$0xf]
    %v83 = vld [vmem:[#allocation2 + $0x3c] sm:$0xf]
    %v84 = vunpack.c.l.bf16 %v68
    %v85 = vunpack.c.l.bf16 %v69
    %v86 = vunpack.c.l.bf16 %v70
    %v87 = vunpack.c.l.bf16 %v71
    %v88 = vunpack.c.l.bf16 %v72
    %v89 = vunpack.c.l.bf16 %v73
    %v90 = vunpack.c.l.bf16 %v74
    %v91 = vunpack.c.l.bf16 %v75
    %v92 = vunpack.c.l.bf16 %v76
    %v93 = vunpack.c.l.bf16 %v77
    %v94 = vunpack.c.l.bf16 %v78
    %v95 = vunpack.c.l.bf16 %v79
    %v96 = vunpack.c.l.bf16 %v80
    %v97 = vunpack.c.l.bf16 %v81
    %v98 = vunpack.c.l.bf16 %v82
    %v99 = vunpack.c.l.bf16 %v83
    %v100 = vadd.f32 %v84, %v85
    %v101 = vrot.slane %v100, 4
    %v102 = vadd.f32 %v100, %v101
    %v103 = vrot.slane %v102, 2
    %v104 = vadd.f32 %v102, %v103
    %v105 = vrot.slane %v104, 1
    %v106 = vadd.f32 %v104, %v105
    %v107 = vadd.f32 %v86, %v87
    %v108 = vrot.slane %v107, 4
    %v109 = vadd.f32 %v107, %v108
    %v110 = vrot.slane %v109, 2
    %v111 = vadd.f32 %v109, %v110
    %v112 = vrot.slane %v111, 1
    %v113 = vadd.f32 %v111, %v112
    %v114 = vadd.f32 %v88, %v89
    %v115 = vrot.slane %v114, 4
    %v116 = vadd.f32 %v114, %v115
    %v117 = vrot.slane %v116, 2
    %v118 = vadd.f32 %v116, %v117
    %v119 = vrot.slane %v118, 1
    %v120 = vadd.f32 %v118, %v119
    %v121 = vadd.f32 %v90, %v91
    %v122 = vrot.slane %v121, 4
    %v123 = vadd.f32 %v121, %v122
    %v124 = vrot.slane %v123, 2
    %v125 = vadd.f32 %v123, %v124
    %v126 = vrot.slane %v125, 1
    %v127 = vadd.f32 %v125, %v126
    %v128 = vadd.f32 %v92, %v93
    %v129 = vrot.slane %v128, 4
    %v130 = vadd.f32 %v128, %v129
    %v131 = vrot.slane %v130, 2
    %v132 = vadd.f32 %v130, %v131
    %v133 = vrot.slane %v132, 1
    %v134 = vadd.f32 %v132, %v133
    %v135 = vadd.f32 %v94, %v95
    %v136 = vrot.slane %v135, 4
    %v137 = vadd.f32 %v135, %v136
    %v138 = vrot.slane %v137, 2
    %v139 = vadd.f32 %v137, %v138
    %v140 = vrot.slane %v139, 1
    %v141 = vadd.f32 %v139, %v140
    %v142 = vadd.f32 %v96, %v97
    %v143 = vrot.slane %v142, 4
    %v144 = vadd.f32 %v142, %v143
    %v145 = vrot.slane %v144, 2
    %v146 = vadd.f32 %v144, %v145
    %v147 = vrot.slane %v146, 1
    %v148 = vadd.f32 %v146, %v147
    %v149 = vadd.f32 %v98, %v99
    %v150 = vrot.slane %v149, 4
    %v151 = vadd.f32 %v149, %v150
    %v152 = vrot.slane %v151, 2
    %v153 = vadd.f32 %v151, %v152
    %v154 = vrot.slane %v153, 1
    %v155 = vadd.f32 %v153, %v154
    %v156 = vmul.f32 %v106, 0.0625
    %v157 = vmul.f32 %v113, 0.0625
    %v158 = vmul.f32 %v120, 0.0625
    %v159 = vmul.f32 %v127, 0.0625
    %v160 = vmul.f32 %v134, 0.0625
    %v161 = vmul.f32 %v141, 0.0625
    %v162 = vmul.f32 %v148, 0.0625
    %v163 = vmul.f32 %v155, 0.0625
    %v164 = vmax.f32 %v84, %v85
    %v165 = vrot.slane %v164, 4
    %v166 = vmax.f32 %v164, %v165
    %v167 = vrot.slane %v166, 2
    %v168 = vmax.f32 %v166, %v167
    %v169 = vrot.slane %v168, 1
    %v170 = vmax.f32 %v168, %v169
    %v171 = vmax.f32 %v86, %v87
    %v172 = vrot.slane %v171, 4
    %v173 = vmax.f32 %v171, %v172
    %v174 = vrot.slane %v173, 2
    %v175 = vmax.f32 %v173, %v174
    %v176 = vrot.slane %v175, 1
    %v177 = vmax.f32 %v175, %v176
    %v178 = vmax.f32 %v88, %v89
    %v179 = vrot.slane %v178, 4
    %v180 = vmax.f32 %v178, %v179
    %v181 = vrot.slane %v180, 2
    %v182 = vmax.f32 %v180, %v181
    %v183 = vrot.slane %v182, 1
    %v184 = vmax.f32 %v182, %v183
    %v185 = vmax.f32 %v90, %v91
    %v186 = vrot.slane %v185, 4
    %v187 = vmax.f32 %v185, %v186
    %v188 = vrot.slane %v187, 2
    %v189 = vmax.f32 %v187, %v188
    %v190 = vrot.slane %v189, 1
    %v191 = vmax.f32 %v189, %v190
    %v192 = vmax.f32 %v92, %v93
    %v193 = vrot.slane %v192, 4
    %v194 = vmax.f32 %v192, %v193
    %v195 = vrot.slane %v194, 2
    %v196 = vmax.f32 %v194, %v195
    %v197 = vrot.slane %v196, 1
    %v198 = vmax.f32 %v196, %v197
    %v199 = vmax.f32 %v94, %v95
    %v200 = vrot.slane %v199, 4
    %v201 = vmax.f32 %v199, %v200
    %v202 = vrot.slane %v201, 2
    %v203 = vmax.f32 %v201, %v202
    %v204 = vrot.slane %v203, 1
    %v205 = vmax.f32 %v203, %v204
    %v206 = vmax.f32 %v96, %v97
    %v207 = vrot.slane %v206, 4
    %v208 = vmax.f32 %v206, %v207
    %v209 = vrot.slane %v208, 2
    %v210 = vmax.f32 %v208, %v209
    %v211 = vrot.slane %v210, 1
    %v212 = vmax.f32 %v210, %v211
    %v213 = vmax.f32 %v98, %v99
    %v214 = vrot.slane %v213, 4
    %v215 = vmax.f32 %v213, %v214
    %v216 = vrot.slane %v215, 2
    %v217 = vmax.f32 %v215, %v216
    %v218 = vrot.slane %v217, 1
    %v219 = vmax.f32 %v217, %v218
    %v220 = vadd.f32 %v156, %v170
    %v221 = vadd.f32 %v157, %v177
    %v222 = vadd.f32 %v158, %v184
    %v223 = vadd.f32 %v159, %v191
    %v224 = vadd.f32 %v160, %v198
    %v225 = vadd.f32 %v161, %v205
    %v226 = vadd.f32 %v162, %v212
    %v227 = vadd.f32 %v163, %v219
    %v228 = vpack.c.bf16 %v220, %v220
    %v229 = vpack.c.bf16 %v221, %v221
    %v230 = vpack.c.bf16 %v222, %v222
    %v231 = vpack.c.bf16 %v223, %v223
    %v232 = vpack.c.bf16 %v224, %v224
    %v233 = vpack.c.bf16 %v225, %v225
    %v234 = vpack.c.bf16 %v226, %v226
    %v235 = vpack.c.bf16 %v227, %v227
    %v236 = vld [vmem:[#allocation5] sm:$0xf]
    %v237 = vld [vmem:[#allocation5 + $0x4] sm:$0xf]
    %v238 = vld [vmem:[#allocation5 + $0x8] sm:$0xf]
    %v239 = vld [vmem:[#allocation5 + $0xc] sm:$0xf]
    %v240 = vld [vmem:[#allocation5 + $0x10] sm:$0xf]
    %v241 = vld [vmem:[#allocation5 + $0x14] sm:$0xf]
    %v242 = vld [vmem:[#allocation5 + $0x18] sm:$0xf]
    %v243 = vld [vmem:[#allocation5 + $0x1c] sm:$0xf]
    %v244 = vld [vmem:[#allocation5 + $0x20] sm:$0xf]
    %v245 = vld [vmem:[#allocation5 + $0x24] sm:$0xf]
    %v246 = vld [vmem:[#allocation5 + $0x28] sm:$0xf]
    %v247 = vld [vmem:[#allocation5 + $0x2c] sm:$0xf]
    %v248 = vld [vmem:[#allocation5 + $0x30] sm:$0xf]
    %v249 = vld [vmem:[#allocation5 + $0x34] sm:$0xf]
    %v250 = vld [vmem:[#allocation5 + $0x38] sm:$0xf]
    %v251 = vld [vmem:[#allocation5 + $0x3c] sm:$0xf]
    %v252 = vld [vmem:[%s2] sm:$0x1]
    %v254 = vperm.slane %v252, 0
    %v264 = vunpack.c.l.b16 %v228
    %v265 = vunpack.c.l.b16 %v229
    %v266 = vunpack.c.l.b16 %v230
    %v267 = vunpack.c.l.b16 %v231
    %v268 = vunpack.c.l.b16 %v232
    %v269 = vunpack.c.l.b16 %v233
    %v270 = vunpack.c.l.b16 %v234
    %v271 = vunpack.c.l.b16 %v235
    %vm272 = vcmask 1041409
    %v273 = vsel %vm272, %v265, %v264
    %vm274 = vcmask 1042434
    %v275 = vsel %vm274, %v266, %v273
    %vm276 = vcmask 1043459
    %v277 = vsel %vm276, %v267, %v275
    %vm278 = vcmask 1044484
    %v279 = vsel %vm278, %v268, %v277
    %vm280 = vcmask 1045509
    %v281 = vsel %vm280, %v269, %v279
    %vm282 = vcmask 1046534
    %v283 = vsel %vm282, %v270, %v281
    %vm284 = vcmask 1047559
    %v285 = vsel %vm284, %v271, %v283
    %v286 = vpack.c.b16 %v285, %v285
    %v304 = vunpack.c.l.b16 %v236
    %v305 = vunpack.c.l.b16 %v237
    %v306 = vunpack.c.l.b16 %v238
    %v307 = vunpack.c.l.b16 %v239
    %v308 = vunpack.c.l.b16 %v240
    %v309 = vunpack.c.l.b16 %v241
    %v310 = vunpack.c.l.b16 %v242
    %v311 = vunpack.c.l.b16 %v243
    %v312 = vunpack.c.l.b16 %v244
    %v313 = vunpack.c.l.b16 %v245
    %v314 = vunpack.c.l.b16 %v246
    %v315 = vunpack.c.l.b16 %v247
    %v316 = vunpack.c.l.b16 %v248
    %v317 = vunpack.c.l.b16 %v249
    %v318 = vunpack.c.l.b16 %v250
    %v319 = vunpack.c.l.b16 %v251
    %v320 = vpack.c.b16 %v305, %v304
    %v321 = vpack.c.b16 %v307, %v306
    %v322 = vpack.c.b16 %v309, %v308
    %v323 = vpack.c.b16 %v311, %v310
    %v324 = vpack.c.b16 %v313, %v312
    %v325 = vpack.c.b16 %v315, %v314
    %v326 = vpack.c.b16 %v317, %v316
    %v327 = vpack.c.b16 %v319, %v318
    %336 = vmatpush.bf16.msra.mxu0 %v327
    %337 = vmatpush.bf16.msra.mxu0 %v326
    %338 = vmatpush.bf16.msra.mxu0 %v325
    %339 = vmatpush.bf16.msra.mxu0 %v324
    %340 = vmatpush.bf16.msra.mxu0 %v323
    %341 = vmatpush.bf16.msra.mxu0 %v322
    %342 = vmatpush.bf16.msra.mxu0 %v321
    %343 = vmatpush.bf16.msra.mxu0 %v320
    %344 = vmatmul.bf16.gmra.mxu0 %v286
    %v345 = vpop.f32.mrf.mxu0
    %v346 = vadd.f32 %v254, %v345
    %v347 = vpop.f32.mrf.mxu0
    %348 = vdwg.mxu0
    %349 = vst [vmem:[#allocation9] sm:$0xff] %v346
    %v350 = vpack.c.bf16 %v346, %v346
    %v351 = vld [vmem:[#allocation7] sm:$0xf]
    %v352 = vld [vmem:[#allocation7 + $0x4] sm:$0xf]
    %v353 = vld [vmem:[#allocation7 + $0x8] sm:$0xf]
    %v354 = vld [vmem:[#allocation7 + $0xc] sm:$0xf]
    %v355 = vld [vmem:[#allocation7 + $0x10] sm:$0xf]
    %v356 = vld [vmem:[#allocation7 + $0x14] sm:$0xf]
    %v357 = vld [vmem:[#allocation7 + $0x18] sm:$0xf]
    %v358 = vld [vmem:[#allocation7 + $0x1c] sm:$0xf]
    %v359 = vld [vmem:[#allocation7 + $0x20] sm:$0xf]
    %v360 = vld [vmem:[#allocation7 + $0x24] sm:$0xf]
    %v361 = vld [vmem:[#allocation7 + $0x28] sm:$0xf]
    %v362 = vld [vmem:[#allocation7 + $0x2c] sm:$0xf]
    %v363 = vld [vmem:[#allocation7 + $0x30] sm:$0xf]
    %v364 = vld [vmem:[#allocation7 + $0x34] sm:$0xf]
    %v365 = vld [vmem:[#allocation7 + $0x38] sm:$0xf]
    %v366 = vld [vmem:[#allocation7 + $0x3c] sm:$0xf]
    %v383 = vunpack.c.l.b16 %v351
    %v384 = vunpack.c.l.b16 %v352
    %v385 = vunpack.c.l.b16 %v353
    %v386 = vunpack.c.l.b16 %v354
    %v387 = vunpack.c.l.b16 %v355
    %v388 = vunpack.c.l.b16 %v356
    %v389 = vunpack.c.l.b16 %v357
    %v390 = vunpack.c.l.b16 %v358
    %v391 = vunpack.c.l.b16 %v359
    %v392 = vunpack.c.l.b16 %v360
    %v393 = vunpack.c.l.b16 %v361
    %v394 = vunpack.c.l.b16 %v362
    %v395 = vunpack.c.l.b16 %v363
    %v396 = vunpack.c.l.b16 %v364
    %v397 = vunpack.c.l.b16 %v365
    %v398 = vunpack.c.l.b16 %v366
    %v399 = vpack.c.b16 %v384, %v383
    %v400 = vpack.c.b16 %v386, %v385
    %v401 = vpack.c.b16 %v388, %v387
    %v402 = vpack.c.b16 %v390, %v389
    %v403 = vpack.c.b16 %v392, %v391
    %v404 = vpack.c.b16 %v394, %v393
    %v405 = vpack.c.b16 %v396, %v395
    %v406 = vpack.c.b16 %v398, %v397
    %415 = vmatpush.bf16.msra.mxu0 %v406
    %416 = vmatpush.bf16.msra.mxu0 %v405
    %417 = vmatpush.bf16.msra.mxu0 %v404
    %418 = vmatpush.bf16.msra.mxu0 %v403
    %419 = vmatpush.bf16.msra.mxu0 %v402
    %420 = vmatpush.bf16.msra.mxu0 %v401
    %421 = vmatpush.bf16.msra.mxu0 %v400
    %422 = vmatpush.bf16.msra.mxu0 %v399
    %423 = vmatmul.bf16.gmra.mxu0 %v350
    %v424 = vpop.f32.mrf.mxu0
    %v425 = vadd.f32 0.0, %v424
    %v426 = vpop.f32.mrf.mxu0
    %427 = vdwg.mxu0
    %428 = vst [vmem:[#allocation8] sm:$0xff] %v425
    // Predicated region
    $region30: #{tpu_custom_call.1} parent=1 // pred_check
      _
    $region31: #{tpu_custom_call.1} parent=1 // pred_check_branch
      %430 = sbr.rel (0) target = $region33
    $region32: #{tpu_custom_call.1} parent=1 // pred_region
      %432 = vsyncadd [#allocation4], 0
      %s434 = sshll.u32 [#allocation8], 4
      %s435 = int_to_ptr.vmem [resolvable:$true] %s434
      %s436 = sshll.u32 %s4, 4
      %s437 = int_to_ptr.hbm [resolvable:$true] %s436
      %439 = dma.vmem_to_hbm [thread:$0]  %s435, 128, %s437, [#allocation4]
    $region33: #{tpu_custom_call.1} parent=1 // pred_fallthru
      _
    // Predicated region
    $region34: #{tpu_custom_call.1} parent=1 // pred_check
      _
    $region35: #{tpu_custom_call.1} parent=1 // pred_check_branch
      %441 = sbr.rel (0) target = $region37
    $region36: #{tpu_custom_call.1} parent=1 // pred_region
      %443 = vsyncadd [#allocation10], 0
      %s445 = sshll.u32 [#allocation9], 4
      %s446 = int_to_ptr.vmem [resolvable:$true] %s445
      %s447 = sshll.u32 %s5, 4
      %s448 = int_to_ptr.hbm [resolvable:$true] %s447
      %450 = dma.vmem_to_hbm [thread:$0]  %s446, 128, %s448, [#allocation10]
    $region37: #{tpu_custom_call.1} parent=1 // pred_fallthru
      _
    // Predicated region
    $region38: #{tpu_custom_call.1} parent=1 // pred_check
      _
    $region39: #{tpu_custom_call.1} parent=1 // pred_check_branch
      %452 = sbr.rel (0) target = $region41
    $region40: #{tpu_custom_call.1} parent=1 // pred_region
      %454 = dma.done [#allocation4], 128
    $region41: #{tpu_custom_call.1} parent=1 // pred_fallthru
      _
    // Predicated region
    $region42: #{tpu_custom_call.1} parent=1 // pred_check
      _
    $region43: #{tpu_custom_call.1} parent=1 // pred_check_branch
      %456 = sbr.rel (0) target = $region45
    $region44: #{tpu_custom_call.1} parent=1 // pred_region
      %458 = dma.done [#allocation10], 128
    $region45: #{tpu_custom_call.1} parent=1 // pred_fallthru
      _
    %459 = vsyncpa [#allocation3], 1
    %460 = vsyncpa [#allocation6], 1
    %461 = vsyncpa [#allocation4], 1
    %462 = vsyncpa [#allocation10], 1

</llo_original>
